<compile_context>
chip_gen: v7x
topology: tpu7x:2x2x1
jax: 0.10.0
libtpu: 0.0.40
codegen_flags: <defaults>
</compile_context>

<pallas_src>
import jax
import jax.numpy as jnp
from jax.experimental import pallas as pl
from jax.experimental.pallas import tpu as pltpu


def _node_dependent_mod_kernel(x_ref, e_ref, o_ref):
    """x_ref: (1, VV, TT); e_ref: (VV, D); o_ref: (1, VV, D, TT)."""
    x = x_ref[...]                      # (1, VV, TT)
    e = e_ref[...]                      # (VV, D)
    # out[0, v, d, t] = x[0, v, t] * e[v, d]   (VPU broadcast multiply; the
    # small per-block relayout work hides under the HBM writeback DMA).
    o_ref[...] = (x[:, :, None, :] * e[None, :, :, None]).astype(o_ref.dtype)


def _choose_tiles(V, D, T, itemsize, out_budget_bytes):
    """Pick (vv, tt).  tt is a multiple of 128 (or full T); vv is a multiple
    of 8 (or full V) and only shrinks when the (vv, D, tt) output block would
    still exceed the budget at tt=128.  Both satisfy the (8,128) rule."""
    # T tile (lane axis of the output block).
    if T <= 128:
        tt = T
    else:
        cap_t = out_budget_bytes // max(1, V * D * itemsize)
        if cap_t >= T:
            tt = T
        else:
            tt = max(128, (cap_t // 128) * 128)
    # V tile (sublane-quantum multiples; only when still over budget).
    if V <= 8 or V * D * tt * itemsize <= out_budget_bytes:
        vv = V
    else:
        cap_v = out_budget_bytes // max(1, D * tt * itemsize)
        if cap_v >= V:
            vv = V
        else:
            vv = max(8, (cap_v // 8) * 8)
    return vv, tt


def node_dependent_mod(x, node_embeddings, *, out_block_budget_bytes=4 << 20):
    """x: (B, V, T); node_embeddings: (V, D).  Returns (B, V, D, T)."""
    B, V, T = x.shape
    Ve, D = node_embeddings.shape
    assert Ve == V, (Ve, V)

    itemsize = jnp.dtype(x.dtype).itemsize
    vv, tt = _choose_tiles(V, D, T, itemsize, out_block_budget_bytes)
    grid = (B, pl.cdiv(V, vv), pl.cdiv(T, tt))

    # x block + emb block + out block; the pipeline double-buffers each.
    blk_bytes = (vv * tt + vv * D + vv * D * tt) * itemsize
    vmem_limit = int(min(48 << 20, max(16 << 20, 5 * blk_bytes)))

    return pl.pallas_call(
        _node_dependent_mod_kernel,
        out_shape=jax.ShapeDtypeStruct((B, V, D, T), x.dtype),
        grid_spec=pltpu.PrefetchScalarGridSpec(
            num_scalar_prefetch=0,
            grid=grid,
            in_specs=[
                # x: (1, vv, tt) -- last two dims are (mult-of-8 | full V,
                # mult-of-128 | full T).
                pl.BlockSpec((1, vv, tt), lambda b, v, t: (b, v, t)),
                # node embeddings: (vv, D); block index constant along the
                # innermost T axis, so it is only re-DMA'd when v changes.
                pl.BlockSpec((vv, D), lambda b, v, t: (v, 0)),
            ],
            out_specs=pl.BlockSpec((1, vv, D, tt), lambda b, v, t: (b, v, 0, t)),
        ),
        compiler_params=pltpu.CompilerParams(
            dimension_semantics=("parallel", "parallel", "parallel"),
            vmem_limit_bytes=vmem_limit,
        ),
    )(x, node_embeddings)


def reference_forward(x, node_embeddings):
    """Plain-JAX reference (mirrors torch.einsum('bvt,vd->bvdt', ...))."""
    return jnp.einsum("bvt,vd->bvdt", x, node_embeddings)


if __name__ == "__main__":
    key = jax.random.PRNGKey(0)
    k1, k2, k3, k4 = jax.random.split(key, 4)

    # Case 1: small shapes consistent with the module
    # (B=2 batches, V=4 nodes, T=128 time steps, D=8 embedding dim).
    B, V, T, D = 2, 4, 128, 8
    x = jax.random.normal(k1, (B, V, T), dtype=jnp.float32)
    node_embeddings = jax.random.normal(k2, (V, D), dtype=jnp.float32)
    out = jax.block_until_ready(node_dependent_mod(x, node_embeddings))
    ref = reference_forward(x, node_embeddings)
    assert out.shape == (B, V, D, T), out.shape
    assert jnp.allclose(out, ref, atol=1e-6, rtol=1e-6), "case 1 mismatch"

    # Case 2: ragged extents with tiling forced via a tiny block budget
    # (exercises the V/T edge blocks: V=12 -> vv=8, T=160 -> tt=128).
    B2, V2, T2, D2 = 2, 12, 160, 8
    x2 = jax.random.normal(k3, (B2, V2, T2), dtype=jnp.float32)
    e2 = jax.random.normal(k4, (V2, D2), dtype=jnp.float32)
    out2 = jax.block_until_ready(
        node_dependent_mod(x2, e2, out_block_budget_bytes=32 * 1024))
    ref2 = reference_forward(x2, e2)
    assert out2.shape == (B2, V2, D2, T2), out2.shape
    assert jnp.allclose(out2, ref2, atol=1e-6, rtol=1e-6), "case 2 mismatch"

    print("KERNEL_OK")
</pallas_src>

<mosaic_0001>
module attributes {stable_mosaic.version = 11 : i64} {
  func.func @_node_dependent_mod_kernel(%arg0: i32, %arg1: i32, %arg2: i32, %arg3: memref<1x4x128xf32, #tpu.memory_space<vmem>>, %arg4: memref<4x8xf32, #tpu.memory_space<vmem>>, %arg5: memref<1x4x8x128xf32, #tpu.memory_space<vmem>>) attributes {dimension_semantics = [#tpu.dimension_semantics<parallel>, #tpu.dimension_semantics<parallel>, #tpu.dimension_semantics<parallel>], iteration_bounds = array<i64: 2, 1, 1>, scalar_prefetch = 0 : i64, scratch_operands = 0 : i64, tpu.core_type = #tpu.core_type<tc>, window_params = [{transform_indices = @transform_0, window_bounds = array<i64: 1, 4, 128>}, {transform_indices = @transform_1, window_bounds = array<i64: 4, 8>}, {transform_indices = @transform_2, window_bounds = array<i64: 1, 4, 8, 128>}]} {
    %c0 = arith.constant 0 : index
    %c0_0 = arith.constant 0 : index
    %c0_1 = arith.constant 0 : index
    %0 = vector.load %arg3[%c0, %c0_0, %c0_1] : memref<1x4x128xf32, #tpu.memory_space<vmem>>, vector<1x4x128xf32>
    %c0_2 = arith.constant 0 : index
    %c0_3 = arith.constant 0 : index
    %1 = vector.load %arg4[%c0_2, %c0_3] : memref<4x8xf32, #tpu.memory_space<vmem>>, vector<4x8xf32>
    %2 = vector.shape_cast %0 : vector<1x4x128xf32> to vector<1x4x1x128xf32>
    %3 = vector.shape_cast %1 : vector<4x8xf32> to vector<1x4x8x1xf32>
    %4 = vector.broadcast %2 : vector<1x4x1x128xf32> to vector<1x4x8x128xf32>
    %5 = vector.broadcast %3 : vector<1x4x8x1xf32> to vector<1x4x8x128xf32>
    %6 = arith.mulf %4, %5 : vector<1x4x8x128xf32>
    %c0_4 = arith.constant 0 : index
    %c0_5 = arith.constant 0 : index
    %c0_6 = arith.constant 0 : index
    %c0_7 = arith.constant 0 : index
    %7 = vector.load %arg5[%c0_4, %c0_5, %c0_6, %c0_7] : memref<1x4x8x128xf32, #tpu.memory_space<vmem>>, vector<1x4x8x128xf32>
    tpu.vector_store %arg5[%c0_4, %c0_5, %c0_6, %c0_7], %6 {strides = array<i32>} : memref<1x4x8x128xf32, #tpu.memory_space<vmem>>, vector<1x4x8x128xf32>,
    return
  }
  func.func @transform_0(%arg0: i32, %arg1: i32, %arg2: i32) -> (i32, i32, i32) {
    %c0_i32 = arith.constant 0 : i32
    return %arg0, %arg1, %arg2 : i32, i32, i32
  }
  func.func @transform_1(%arg0: i32, %arg1: i32, %arg2: i32) -> (i32, i32) {
    %c0_i32 = arith.constant 0 : i32
    %c0_i32_0 = arith.constant 0 : i32
    return %arg1, %c0_i32 : i32, i32
  }
  func.func @transform_2(%arg0: i32, %arg1: i32, %arg2: i32) -> (i32, i32, i32, i32) {
    %c0_i32 = arith.constant 0 : i32
    %c0_i32_0 = arith.constant 0 : i32
    return %arg0, %arg1, %c0_i32, %arg2 : i32, i32, i32, i32
  }
}

</mosaic_0001>

<llo_original>
// kernel: tpu_custom_call.1
$region0: #{tpu_custom_call.1}
  #allocation0 [shape = 'u32[]', space=smem, size = 0x4, offset = 0x4, fixed_abs, tag = 'smem constant byte address 0x4 - core index']
  #allocation1 [shape = 'u32[144,128]{1,0:T(1,128)}', space=vmem, size = 0x12000, scoped, tag = 'internal scratch']
  %s0 = inlined_call_operand.hbm [shape: f32[2,4,128], index: 0, kind: input, shape index: {}]
  %s1 = inlined_call_operand.hbm [shape: f32[4,8], index: 1, kind: input, shape index: {}]
  %s2 = inlined_call_operand.hbm [shape: f32[2,4,8,128], index: 2, kind: output, shape index: {}]
  %s3 = sld [smem:[#allocation0]]
  $region49: #{tpu_custom_call.1} parent=0
    _
  %s5 = ssub.s32 1, %s3
  %s6 = scalar_select 0, %s5, %s3
  $region1: #{tpu_custom_call.1} parent=0
    #allocation2 [shape = 'u8[4096]{0}', space=vmem, size = 0x1000, scoped, tag = 'input window, operand 0']
    #allocation3 [shape = 's32[2]{0}', space=sflag, size = 0x8, scoped, tag = 'scoped memory for tpu_custom_call.1']
    #allocation4 [shape = 's32[2]{0}', space=sflag, size = 0x8, scoped, tag = 'scoped memory for tpu_custom_call.1']
    #allocation5 [shape = 'u8[2048]{0}', space=vmem, size = 0x800, scoped, tag = 'input window, operand 1, single buffered']
    #allocation6 [shape = 's32[1]{0}', space=sflag, size = 0x4, scoped, tag = 'scoped memory for tpu_custom_call.1']
    #allocation7 [shape = 'u8[32768]{0}', space=vmem, size = 0x8000, scoped, tag = 'output window, operand 0']
    %7 = vsyncpa [#allocation3], 0
    %s8 = scalar_lea.sflag [#allocation3], 1
    %9 = vsyncpa %s8, 0
    %10 = vsyncpa [#allocation6], 0
    %11 = vsyncpa [#allocation4], 0
    %s12 = scalar_lea.sflag [#allocation4], 1
    %13 = vsyncpa %s12, 0
    loop: start=0, step=1, limit=4
    $region2: #{tpu_custom_call.1} parent=1 // loop_pre_header
      _
    $region3: #{tpu_custom_call.1} parent=1 // loop_header
      %s15 = sphi 0, %s19
      %p16 = scmp.ge.s32.totalorder %s15, 4
      %s22 = sphi 0, %s41
      %s23 = sphi 0, %s37
      %s24 = sphi 0, %s33
      %s25 = sphi 0, %s22
      %s26 = sphi 0, %s23
      %s27 = sphi 0, %s24
      %s28 = sphi 0, %s25
      %s29 = sphi 0, %s26
      %s30 = sphi 0, %s27
      %s48 = sphi 0, %s50
      %s51 = sphi 0, %s48
      %s52 = sphi 0, %s51
      %s68 = sphi 0, %s52
      %s74 = sphi 0, %s76
      %s77 = sphi 0, %s74
      %s78 = sphi 0, %s77
      %s94 = sphi 0, %s78
      %s104 = sphi 0, %s106
      %s107 = sphi 0, %s104
      %s108 = sphi 0, %s107
      %s124 = sphi 0, %s108
    $region4: #{tpu_custom_call.1} parent=1 // loop_header_branch
      %18 = sbr.rel (%p16) target = $region8
    $region5: #{tpu_custom_call.1} parent=1 // loop_body
      %s20 = ssub.s32 %s15, 1
      %s21 = ssub.s32 %s15, 2
      %s31 = sadd.s32 1, %s24
      %p32 = scmp.ge.s32.totalorder %s31, 1
      %s33 = scalar_select %p32, 0, %s31
      %s34 = sadd.s32 1, %s23
      %s35 = scalar_select %p32, %s34, %s23
      %p36 = scmp.ge.s32.totalorder %s35, 1
      %s37 = scalar_select %p36, 0, %s35
      %s38 = sadd.s32 1, %s22
      %s39 = scalar_select %p36, %s38, %s22
      %p40 = scmp.ge.s32.totalorder %s39, 2
      %s41 = scalar_select %p40, 0, %s39
      %s42 = ssub.s32 %s22, %s41
      %s43 = ssub.s32 %s23, %s37
      %s44 = sor.u32 %s42, %s43
      %s45 = ssub.s32 %s24, %s33
      %s46 = sor.u32 %s44, %s45
      %p47 = scmp.eq.s32.totalorder %s46, 0
      %s49 = sadd.s32 %s48, 1
      %s50 = scalar_select %p47, %s48, %s49
      %p53 = pneg %p47
      %p54 = scmp.eq.s32.totalorder %s15, 1
      %p55 = por %p53, %p54
      %p56 = scmp.ne.s32.totalorder %s48, %s51
      %p57 = scmp.eq.s32.totalorder %s15, 0
      %p58 = por %p56, %p57
      %p59 = scmp.ne.s32.totalorder %s48, %s51
      %p60 = scmp.eq.s32.totalorder %s20, 1
      %p61 = por %p59, %p60
      %p62 = scmp.ne.s32.totalorder %s51, %s52
      %p63 = scmp.eq.s32.totalorder %s20, 0
      %p64 = por %p62, %p63
      %p65 = scmp.ne.s32.totalorder %s51, %s52
      %p66 = scmp.eq.s32.totalorder %s21, 1
      %p67 = por %p65, %p66
      %p69 = scmp.ne.s32.totalorder %s52, %s68
      %p70 = scmp.eq.s32.totalorder %s21, 0
      %p71 = por %p69, %p70
      %s72 = ssub.s32 %s23, %s37
      %p73 = scmp.eq.s32.totalorder %s72, 0
      %s75 = sadd.s32 %s74, 1
      %s76 = scalar_select %p73, %s74, %s75
      %p79 = pneg %p73
      %p80 = scmp.eq.s32.totalorder %s15, 1
      %p81 = por %p79, %p80
      %p82 = scmp.ne.s32.totalorder %s74, %s77
      %p83 = scmp.eq.s32.totalorder %s15, 0
      %p84 = por %p82, %p83
      %p85 = scmp.ne.s32.totalorder %s74, %s77
      %p86 = scmp.eq.s32.totalorder %s20, 1
      %p87 = por %p85, %p86
      %p88 = scmp.ne.s32.totalorder %s77, %s78
      %p89 = scmp.eq.s32.totalorder %s20, 0
      %p90 = por %p88, %p89
      %p91 = scmp.ne.s32.totalorder %s77, %s78
      %p92 = scmp.eq.s32.totalorder %s21, 1
      %p93 = por %p91, %p92
      %p95 = scmp.ne.s32.totalorder %s78, %s94
      %p96 = scmp.eq.s32.totalorder %s21, 0
      %p97 = por %p95, %p96
      %s98 = ssub.s32 %s22, %s41
      %s99 = ssub.s32 %s23, %s37
      %s100 = sor.u32 %s98, %s99
      %s101 = ssub.s32 %s24, %s33
      %s102 = sor.u32 %s100, %s101
      %p103 = scmp.eq.s32.totalorder %s102, 0
      %s105 = sadd.s32 %s104, 1
      %s106 = scalar_select %p103, %s104, %s105
      %p109 = pneg %p103
      %p110 = scmp.eq.s32.totalorder %s15, 1
      %p111 = por %p109, %p110
      %p112 = scmp.ne.s32.totalorder %s104, %s107
      %p113 = scmp.eq.s32.totalorder %s15, 0
      %p114 = por %p112, %p113
      %p115 = scmp.ne.s32.totalorder %s104, %s107
      %p116 = scmp.eq.s32.totalorder %s20, 1
      %p117 = por %p115, %p116
      %p118 = scmp.ne.s32.totalorder %s107, %s108
      %p119 = scmp.eq.s32.totalorder %s20, 0
      %p120 = por %p118, %p119
      %p121 = scmp.ne.s32.totalorder %s107, %s108
      %p122 = scmp.eq.s32.totalorder %s21, 1
      %p123 = por %p121, %p122
      %p125 = scmp.ne.s32.totalorder %s108, %s124
      %p126 = scmp.eq.s32.totalorder %s21, 0
      %p127 = por %p125, %p126
      %p128 = scmp.le.s32.totalorder 1, %s15
      %p129 = scmp.lt.s32.totalorder %s15, 3
      %p130 = pnand %p128, %p129
      %p131 = pneg %p130
      // Predicated region
      $region9: #{tpu_custom_call.1} parent=5 // pred_check
        _
      $region10: #{tpu_custom_call.1} parent=5 // pred_check_branch
        %133 = sbr.rel (%p130) target = $region12
      $region11: #{tpu_custom_call.1} parent=5 // pred_region
        %s134 = ssub.s32 %s15, 1
        // Predicated region
        $region13: #{tpu_custom_call.1} parent=11 // pred_check
          %p135 = pneg %p90
        $region14: #{tpu_custom_call.1} parent=11 // pred_check_branch
          %137 = sbr.rel (%p135) target = $region16
        $region15: #{tpu_custom_call.1} parent=11 // pred_region
          %s139 = ssub.s32 64, 64
          %140 = vsyncadd [#allocation6], %s139
          %s141 = smul.addr %s26, 64
          %s142 = scalar_lea.hbm %s1, %s141
          %s144 = sshll.u32 [#allocation5], 4
          %s145 = int_to_ptr.vmem [resolvable:$true] %s144
          %147 = dma.hbm_to_vmem [thread:$0]  %s142, 64, %s145, [#allocation6]
        $region16: #{tpu_custom_call.1} parent=11 // pred_fallthru
          _
      $region12: #{tpu_custom_call.1} parent=5 // pred_fallthru
        _
      %p148 = scmp.lt.s32.totalorder %s15, 2
      // Predicated region
      $region17: #{tpu_custom_call.1} parent=5 // pred_check
        %p149 = pneg %p148
      $region18: #{tpu_custom_call.1} parent=5 // pred_check_branch
        %151 = sbr.rel (%p149) target = $region20
      $region19: #{tpu_custom_call.1} parent=5 // pred_region
        // Predicated region
        $region21: #{tpu_custom_call.1} parent=19 // pred_check
          %p152 = pneg %p58
        $region22: #{tpu_custom_call.1} parent=19 // pred_check_branch
          %154 = sbr.rel (%p152) target = $region24
        $region23: #{tpu_custom_call.1} parent=19 // pred_region
          %s155 = sand.u32 %s48, 1
          %s156 = scalar_lea.sflag [#allocation3], %s155
          %s157 = sand.u32 %s48, 1
          %s158 = smul.addr %s157, 4
          %s159 = scalar_lea.vmem [#allocation2], %s158
          %s161 = ssub.s32 64, 64
          %162 = vsyncadd %s156, %s161
          %s163 = sadd.s32 %s24, %s23
          %s164 = sadd.s32 %s163, %s22
          %s165 = smul.addr %s164, 64
          %s166 = scalar_lea.hbm %s0, %s165
          %s168 = sshll.u32 %s159, 4
          %s169 = int_to_ptr.vmem [resolvable:$true] %s168
          %171 = dma.hbm_to_vmem [thread:$0]  %s166, 64, %s169, %s156
        $region24: #{tpu_custom_call.1} parent=19 // pred_fallthru
          _
      $region20: #{tpu_custom_call.1} parent=5 // pred_fallthru
        _
      %p172 = scmp.le.s32.totalorder 1, %s15
      %p173 = scmp.lt.s32.totalorder %s15, 3
      %p174 = pnand %p172, %p173
      %p175 = pneg %p174
      // Predicated region
      $region25: #{tpu_custom_call.1} parent=5 // pred_check
        _
      $region26: #{tpu_custom_call.1} parent=5 // pred_check_branch
        %177 = sbr.rel (%p174) target = $region28
      $region27: #{tpu_custom_call.1} parent=5 // pred_region
        %s178 = ssub.s32 %s15, 1
        %s179 = sand.u32 %s51, 1
        %s180 = scalar_lea.sflag [#allocation3], %s179
        %s181 = sand.u32 %s51, 1
        %s182 = smul.addr %s181, 4
        %s183 = scalar_lea.vmem [#allocation2], %s182
        // Predicated region
        $region29: #{tpu_custom_call.1} parent=27 // pred_check
          %p184 = pneg %p64
        $region30: #{tpu_custom_call.1} parent=27 // pred_check_branch
          %186 = sbr.rel (%p184) target = $region32
        $region31: #{tpu_custom_call.1} parent=27 // pred_region
          %187 = dma.done %s180, 64
        $region32: #{tpu_custom_call.1} parent=27 // pred_fallthru
          _
        // Predicated region
        $region33: #{tpu_custom_call.1} parent=27 // pred_check
          %p188 = pneg %p90
        $region34: #{tpu_custom_call.1} parent=27 // pred_check_branch
          %190 = sbr.rel (%p188) target = $region36
        $region35: #{tpu_custom_call.1} parent=27 // pred_region
          %191 = dma.done [#allocation6], 64
        $region36: #{tpu_custom_call.1} parent=27 // pred_fallthru
          _
        %s192 = sand.u32 %s51, 1
        %s193 = scalar_lea.sflag [#allocation3], %s192
        %s194 = sand.u32 %s51, 1
        %s195 = smul.addr %s194, 4
        %s196 = scalar_lea.vmem [#allocation2], %s195
        %p197 = pneg %p64
        %p198 = pneg %p61
        %p199 = pneg %p90
        %p200 = pneg %p87
        %p201 = pneg %p120
        %p202 = pneg %p117
        %s203 = sand.u32 %s107, 1
        %s204 = scalar_lea.sflag [#allocation4], %s203
        %s205 = sand.u32 %s107, 1
        %s206 = smul.addr %s205, 32
        %s207 = scalar_lea.vmem [#allocation7], %s206
        %s208 = smul.u32 4, %s26
        %v209 = vld [vmem:[%s183] sm:$0xf]
        %v210 = vld [vmem:[#allocation5] sm:$0xf]
        %v213 = vunpack.c.l.s4 1966171168
        %v214 = vunpack.c.0.s8 %v213
        %v215 = vlaneseq
        %v216 = vshrl.u32 %v215, 7
        %v217 = vsub.s32 %v214, %v216
        %v218 = vrot.slane %v209, %v217
        %v219 = vcombine.high %v218, %v218
        %v221 = vunpack.c.l.s4 1966171168
        %v222 = vunpack.c.0.s8 %v221
        %v223 = vlaneseq
        %v224 = vshrl.u32 %v223, 7
        %v225 = vsub.s32 %v222, %v224
        %v226 = vrot.slane %v218, %v225
        %v228 = vunpack.c.l.s4 1966171168
        %v229 = vunpack.c.0.s8 %v228
        %v230 = vlaneseq
        %v231 = vshrl.u32 %v230, 7
        %v232 = vsub.s32 %v229, %v231
        %v233 = vrot.slane %v219, %v232
        %v234 = vcombine.high %v226, %v226
        %v235 = vcombine.high %v233, %v233
        %v236 = vlaneseq
        %v237 = vshrl.u32 %v236, 7
        %v238 = vsub.s32 0, %v237
        %v239 = vrot.slane %v210, %v238
        %241 = vbcast.lane.b32.xlu0 %v239, 256
        %v242 = vpop.permute.xlu0 %241
        %v243 = vlaneseq
        %v244 = vshrl.u32 %v243, 7
        %v245 = vsub.s32 1, %v244
        %v246 = vrot.slane %v210, %v245
        %248 = vbcast.lane.b32.xlu0 %v246, 256
        %v249 = vpop.permute.xlu0 %248
        %v250 = vlaneseq
        %v251 = vshrl.u32 %v250, 7
        %v252 = vsub.s32 2, %v251
        %v253 = vrot.slane %v210, %v252
        %255 = vbcast.lane.b32.xlu0 %v253, 256
        %v256 = vpop.permute.xlu0 %255
        %v257 = vlaneseq
        %v258 = vshrl.u32 %v257, 7
        %v259 = vsub.s32 3, %v258
        %v260 = vrot.slane %v210, %v259
        %262 = vbcast.lane.b32.xlu0 %v260, 256
        %v263 = vpop.permute.xlu0 %262
        %v264 = vlaneseq
        %v265 = vshrl.u32 %v264, 7
        %v266 = vsub.s32 0, %v265
        %v267 = vrot.slane %v226, %v266
        %v268 = vlaneseq
        %v269 = vshrl.u32 %v268, 7
        %v270 = vsub.s32 0, %v269
        %v271 = vrot.slane %v233, %v270
        %v272 = vlaneseq
        %v273 = vshrl.u32 %v272, 7
        %v274 = vsub.s32 0, %v273
        %v275 = vrot.slane %v234, %v274
        %v276 = vlaneseq
        %v277 = vshrl.u32 %v276, 7
        %v278 = vsub.s32 0, %v277
        %v279 = vrot.slane %v235, %v278
        %v284 = vmul.f32 %v267, %v242
        %v285 = vmul.f32 %v271, %v249
        %v286 = vmul.f32 %v275, %v256
        %v287 = vmul.f32 %v279, %v263
        %288 = vst [vmem:[%s207] sm:$0xff] %v284
        %289 = vst [vmem:[%s207 + $0x8] sm:$0xff] %v285
        %290 = vst [vmem:[%s207 + $0x10] sm:$0xff] %v286
        %291 = vst [vmem:[%s207 + $0x18] sm:$0xff] %v287
        %s292 = sand.u32 %s107, 1
        %s293 = scalar_lea.sflag [#allocation4], %s292
        %s294 = sand.u32 %s107, 1
        %s295 = smul.addr %s294, 32
        %s296 = scalar_lea.vmem [#allocation7], %s295
        // Predicated region
        $region37: #{tpu_custom_call.1} parent=27 // pred_check
          %p297 = pneg %p117
        $region38: #{tpu_custom_call.1} parent=27 // pred_check_branch
          %299 = sbr.rel (%p297) target = $region40
        $region39: #{tpu_custom_call.1} parent=27 // pred_region
          %s300 = smul.u32 4, %s26
          %s302 = ssub.s32 512, 512
          %303 = vsyncadd %s293, %s302
          %s304 = sadd.s32 %s27, %s300
          %s305 = smul.addr %s25, 4
          %s306 = sadd.s32 %s304, %s305
          %s307 = smul.addr %s306, 128
          %s308 = scalar_lea.hbm %s2, %s307
          %s309 = sshll.u32 %s296, 4
          %s310 = int_to_ptr.vmem [resolvable:$true] %s309
          %315 = dma.vmem_to_hbm [thread:$0]  %s310, 512, %s308, %s293, 128, 128, 8
        $region40: #{tpu_custom_call.1} parent=27 // pred_fallthru
          _
      $region28: #{tpu_custom_call.1} parent=5 // pred_fallthru
        _
      %p316 = scmp.le.s32.totalorder 2, %s15
      // Predicated region
      $region41: #{tpu_custom_call.1} parent=5 // pred_check
        %p317 = pneg %p316
      $region42: #{tpu_custom_call.1} parent=5 // pred_check_branch
        %319 = sbr.rel (%p317) target = $region44
      $region43: #{tpu_custom_call.1} parent=5 // pred_region
        %s320 = ssub.s32 %s15, 2
        // Predicated region
        $region45: #{tpu_custom_call.1} parent=43 // pred_check
          %p321 = pneg %p123
        $region46: #{tpu_custom_call.1} parent=43 // pred_check_branch
          %323 = sbr.rel (%p321) target = $region48
        $region47: #{tpu_custom_call.1} parent=43 // pred_region
          %s324 = sand.u32 %s108, 1
          %s325 = scalar_lea.sflag [#allocation4], %s324
          %s326 = sand.u32 %s108, 1
          %s327 = smul.addr %s326, 32
          %s328 = scalar_lea.vmem [#allocation7], %s327
          %329 = dma.done %s325, 512
        $region48: #{tpu_custom_call.1} parent=43 // pred_fallthru
          _
      $region44: #{tpu_custom_call.1} parent=5 // pred_fallthru
        _
    $region6: #{tpu_custom_call.1} parent=1 // loop_footer
      %s19 = sadd.s32 1, %s15
    $region7: #{tpu_custom_call.1} parent=1 // loop_footer_branch
      %14 = sbr.rel target = $region3
    $region8: #{tpu_custom_call.1} parent=1 // loop_exit
      _
    %330 = vsyncpa [#allocation3], 1
    %s331 = scalar_lea.sflag [#allocation3], 1
    %332 = vsyncpa %s331, 1
    %333 = vsyncpa [#allocation6], 1
    %334 = vsyncpa [#allocation4], 1
    %s335 = scalar_lea.sflag [#allocation4], 1
    %336 = vsyncpa %s335, 1

</llo_original>
